<compile_context>
chip_gen: v7x
topology: tpu7x:2x2x1
jax: 0.10.0
libtpu: 0.0.40
codegen_flags: <defaults>
</compile_context>

<pallas_src>
import jax
import jax.numpy as jnp
from jax.experimental import pallas as pl
from jax.experimental.pallas import tpu as pltpu


def _round_up(x, m):
    return (x + m - 1) // m * m


def _vmem_limit_bytes():
    """Generation-aware scoped-VMEM limit (~75% of physical, capped at 100 MiB)."""
    try:
        cap = int(pltpu.get_tpu_info().vmem_capacity_bytes)
    except Exception:
        cap = 128 * 1024 * 1024            # v5e/v6e default if the query is unavailable
    return min(100 * 1024 * 1024, cap * 3 // 4)   # 96 MiB on 128 MiB parts, 48 MiB on v7x


def _ff_kernel(x_ref, w1_ref, b1_ref, w2_ref, b2_ref, o_ref, acc_ref):
    # x_ref : (tm, Ep) row tile            (constant over k -> fetched once per row tile)
    # w1_ref: (Ep, th) W1 chunk            (streamed over k, or resident if th == Hp)
    # b1_ref: (1,  th) f32 bias chunk
    # w2_ref: (th, Ep) W2 chunk
    # b2_ref: (1,  Ep) f32 bias            (resident)
    # o_ref : (tm, Ep) output row tile     (written only on the last k step)
    # acc   : (tm, Ep) f32 accumulator scratch
    k = pl.program_id(1)

    @pl.when(k == 0)
    def _init():
        acc_ref[...] = jnp.zeros_like(acc_ref)

    x = x_ref[...].astype(w1_ref.dtype)                       # bf16 fast path if weights bf16
    h = jnp.dot(x, w1_ref[...], preferred_element_type=jnp.float32)
    h = jnp.maximum(h + b1_ref[...], 0.0)                     # f32 bias + ReLU (VPU)
    acc_ref[...] += jnp.dot(h.astype(w2_ref.dtype), w2_ref[...],
                            preferred_element_type=jnp.float32)

    @pl.when(k == pl.num_programs(1) - 1)
    def _finalize():
        o_ref[...] = (acc_ref[...] + b2_ref[...]).astype(o_ref.dtype)


def prepare_feed_forward(w1, b1, w2, b2, *, compute_dtype=None):
    """Pad/cast the weights ONCE (not per forward call).

    w1: (E, H), w2: (H, E)  -- transposed relative to torch.nn.Linear.weight,
    so the math  relu(x @ w1 + b1) @ w2 + b2  matches the PyTorch module.
    """
    E, H = w1.shape
    assert w2.shape == (H, E) and b1.shape == (H,) and b2.shape == (E,)
    wdt = jnp.dtype(compute_dtype) if compute_dtype is not None else jnp.dtype(w1.dtype)
    Ep = _round_up(E, 128)      # lane-dense contraction / output dim
    Hp = _round_up(H, 256)      # 256-aligned so every 256-multiple chunk size divides it
    w1 = w1.astype(wdt)
    w2 = w2.astype(wdt)
    if (Ep, Hp) == (E, H):
        w1p, w2p = w1, w2       # aligned fast path: no padding copies at all
    else:
        w1p = jnp.zeros((Ep, Hp), wdt).at[:E, :H].set(w1)
        w2p = jnp.zeros((Hp, Ep), wdt).at[:H, :E].set(w2)
    b1p = jnp.zeros((1, Hp), jnp.float32).at[0, :H].set(b1.astype(jnp.float32))
    b2p = jnp.zeros((1, Ep), jnp.float32).at[0, :E].set(b2.astype(jnp.float32))
    return dict(E=E, H=H, Ep=Ep, Hp=Hp, w1=w1p, b1=b1p, w2=w2p, b2=b2p, wdt=wdt)


def _pick_tiles(M, Ep, Hp, x_bytes, w_bytes, vmem_limit, tm, th):
    # Sublane multiple for the row tile: 8 (32-bit), 16 (16-bit), 32 (8-bit).
    nb = min(x_bytes, w_bytes)
    sub = 8 if nb >= 4 else (16 if nb == 2 else 32)

    if tm is None:
        if Ep <= 256 and Hp <= 256:
            tm_cap = 2048          # tiny features: amortise per-grid-step overhead
        elif Ep <= 4096:
            tm_cap = 512
        else:
            tm_cap = 256           # bound acc / x / out tile footprint for very wide layers
        tm = min(tm_cap, _round_up(M, sub))
    tm = max(sub, _round_up(tm, sub))

    budget = int(0.55 * vmem_limit)

    def vmem_bytes(th_, nbuf):
        return (nbuf * 2 * Ep * th_ * w_bytes      # W1 + W2 chunks (nbuf buffers each)
                + tm * th_ * (4 + w_bytes)         # f32 h + its cast copy
                + tm * Ep * 4                      # f32 accumulator scratch
                + 4 * tm * Ep * x_bytes)           # double-buffered x and out tiles

    if th is None:
        if vmem_bytes(Hp, 1) <= budget:
            th = Hp                                # full weights resident, single k step
        else:
            th = min(Hp, 2048)
            th -= th % 256
            while th > 256 and (Hp % th != 0 or vmem_bytes(th, 2) > budget):
                th -= 256
            th = max(th, 256)
    else:
        th = min(max(128, th - th % 128), Hp)
        while Hp % th != 0:                        # Hp is a multiple of 256 -> terminates
            th -= 128
    return tm, th


def feed_forward(x, params, *, tm=None, th=None):
    """out = relu(x @ W1 + b1) @ W2 + b2 with params from prepare_feed_forward."""
    E, Ep, Hp = params["E"], params["Ep"], params["Hp"]
    w1p, b1p, w2p, b2p = params["w1"], params["b1"], params["w2"], params["b2"]

    orig_shape = x.shape
    assert orig_shape[-1] == E
    x2d = x.reshape(-1, E)
    M = x2d.shape[0]
    if Ep != E:
        # Feature padding only for non-lane-aligned E (small/demo dims).
        x2d = jnp.pad(x2d, ((0, 0), (0, Ep - E)))
    # No row padding: ragged last row block reads garbage rows whose outputs
    # are clipped by the (M, Ep) out_shape and never stored.

    x_bytes = jnp.dtype(x2d.dtype).itemsize
    w_bytes = jnp.dtype(params["wdt"]).itemsize
    vmem_limit = _vmem_limit_bytes()
    tm, th = _pick_tiles(M, Ep, Hp, x_bytes, w_bytes, vmem_limit, tm, th)

    grid_m = pl.cdiv(M, tm)
    nk = Hp // th
    resident = {"pipeline_mode": pl.Buffered(1)} if nk == 1 else {}

    in_specs = [
        pl.BlockSpec((tm, Ep), lambda i, k: (i, 0)),                       # x rows
        pl.BlockSpec((Ep, th), lambda i, k: (0, k), **resident),           # W1 chunk
        pl.BlockSpec((1, th), lambda i, k: (0, k), **resident),            # b1 chunk
        pl.BlockSpec((th, Ep), lambda i, k: (k, 0), **resident),           # W2 chunk
        pl.BlockSpec((1, Ep), lambda i, k: (0, 0),
                     pipeline_mode=pl.Buffered(1)),                        # b2 (resident)
    ]
    out_spec = pl.BlockSpec((tm, Ep), lambda i, k: (i, 0))

    cost = pl.CostEstimate(
        flops=4 * M * Ep * Hp,                                  # two matmuls
        transcendentals=0,
        bytes_accessed=(2 * M * Ep * x_bytes                    # x in + out
                        + 2 * Ep * Hp * w_bytes * (1 if nk == 1 else grid_m)
                        + (Hp + Ep) * 4),                       # f32 biases
    )

    out = pl.pallas_call(
        _ff_kernel,
        out_shape=jax.ShapeDtypeStruct((M, Ep), x2d.dtype),
        grid_spec=pltpu.PrefetchScalarGridSpec(
            num_scalar_prefetch=0,
            grid=(grid_m, nk),
            in_specs=in_specs,
            out_specs=out_spec,
            scratch_shapes=[pltpu.VMEM((tm, Ep), jnp.float32)],
        ),
        compiler_params=pltpu.CompilerParams(
            dimension_semantics=("parallel", "arbitrary"),      # rows megacore, H reduction
            vmem_limit_bytes=vmem_limit,
        ),
        cost_estimate=cost,
    )(x2d, w1p, b1p, w2p, b2p)

    if Ep != E:
        out = out[:, :E]
    return out.reshape(orig_shape)


if __name__ == "__main__":
    # model_params (small, consistent with the module)
    embedding_dim = 32
    ff_hidden_dim = 64
    batch, seq = 2, 8

    key = jax.random.PRNGKey(0)
    kx, kw1, kb1, kw2, kb2, kx2, kw3, kb3, kw4, kb4, kx3 = jax.random.split(key, 11)

    # PyTorch-Linear-style uniform init bounds (deterministic).
    bound1 = 1.0 / jnp.sqrt(embedding_dim)
    bound2 = 1.0 / jnp.sqrt(ff_hidden_dim)
    w1 = jax.random.uniform(kw1, (embedding_dim, ff_hidden_dim), jnp.float32, -bound1, bound1)
    b1 = jax.random.uniform(kb1, (ff_hidden_dim,), jnp.float32, -bound1, bound1)
    w2 = jax.random.uniform(kw2, (ff_hidden_dim, embedding_dim), jnp.float32, -bound2, bound2)
    b2 = jax.random.uniform(kb2, (embedding_dim,), jnp.float32, -bound2, bound2)

    def ref_fn(xx, a1, c1, a2, c2):
        return jnp.maximum(xx @ a1 + c1, 0.0) @ a2 + c2

    # 1) small f32 case (padded feature dims, single-step resident weights).
    params_f32 = prepare_feed_forward(w1, b1, w2, b2)
    x = jax.random.normal(kx, (batch, seq, embedding_dim), jnp.float32)
    out = jax.block_until_ready(feed_forward(x, params_f32))
    assert out.shape == x.shape
    assert jnp.allclose(out, ref_fn(x, w1, b1, w2, b2), atol=1e-2, rtol=1e-2)

    # 2) row count not divisible by the tile -> ragged last row block, no row padding.
    x_big = jax.random.normal(kx2, (3, 100, embedding_dim), jnp.float32)
    out_big = jax.block_until_ready(feed_forward(x_big, params_f32, tm=128))
    assert out_big.shape == x_big.shape
    assert jnp.allclose(out_big, ref_fn(x_big, w1, b1, w2, b2), atol=1e-2, rtol=1e-2)

    # 3) bf16 operands with f32 accumulation (MXU fast path); weights cast once.
    params_bf16 = prepare_feed_forward(w1, b1, w2, b2, compute_dtype=jnp.bfloat16)
    out_bf16 = jax.block_until_ready(feed_forward(x, params_bf16))
    assert out_bf16.shape == x.shape
    assert jnp.allclose(out_bf16, ref_fn(x, w1, b1, w2, b2), atol=5e-2, rtol=5e-2)

    # 4) lane-aligned dims (no padding copies) + forced H streaming (nk > 1):
    #    exercises the accumulator path across multiple W1/W2 chunks and row tiles.
    E2, H2 = 128, 512
    b1_2 = 1.0 / jnp.sqrt(E2)
    b2_2 = 1.0 / jnp.sqrt(H2)
    w1b = jax.random.uniform(kw3, (E2, H2), jnp.float32, -b1_2, b1_2)
    b1b = jax.random.uniform(kb3, (H2,), jnp.float32, -b1_2, b1_2)
    w2b = jax.random.uniform(kw4, (H2, E2), jnp.float32, -b2_2, b2_2)
    b2b = jax.random.uniform(kb4, (E2,), jnp.float32, -b2_2, b2_2)
    params_big = prepare_feed_forward(w1b, b1b, w2b, b2b)
    x_al = jax.random.normal(kx3, (4, 160, E2), jnp.float32)     # M=640 -> ragged 2nd row tile
    out_al = jax.block_until_ready(feed_forward(x_al, params_big, tm=512, th=256))
    assert out_al.shape == x_al.shape
    assert jnp.allclose(out_al, ref_fn(x_al, w1b, b1b, w2b, b2b), atol=1e-2, rtol=1e-2)

    print("KERNEL_OK")
</pallas_src>

<mosaic_0001>
module attributes {stable_mosaic.version = 11 : i64} {
  func.func @_ff_kernel(%arg0: i32, %arg1: i32, %arg2: memref<16x128xf32, #tpu.memory_space<vmem>>, %arg3: memref<128x256xf32, #tpu.memory_space<vmem>>, %arg4: memref<1x256xf32, #tpu.memory_space<vmem>>, %arg5: memref<256x128xf32, #tpu.memory_space<vmem>>, %arg6: memref<1x128xf32, #tpu.memory_space<vmem>>, %arg7: memref<16x128xf32, #tpu.memory_space<vmem>>, %arg8: memref<16x128xf32, #tpu.memory_space<vmem>>) attributes {dimension_semantics = [#tpu.dimension_semantics<parallel>, #tpu.dimension_semantics<arbitrary>], iteration_bounds = array<i64: 1, 1>, scalar_prefetch = 0 : i64, scratch_operands = 1 : i64, tpu.core_type = #tpu.core_type<tc>, window_params = [{transform_indices = @transform_0, window_bounds = array<i64: 16, 128>}, {pipeline_mode = #tpu.pipeline_mode<synchronous>, transform_indices = @transform_1, window_bounds = array<i64: 128, 256>}, {pipeline_mode = #tpu.pipeline_mode<synchronous>, transform_indices = @transform_2, window_bounds = array<i64: 1, 256>}, {pipeline_mode = #tpu.pipeline_mode<synchronous>, transform_indices = @transform_3, window_bounds = array<i64: 256, 128>}, {pipeline_mode = #tpu.pipeline_mode<synchronous>, transform_indices = @transform_4, window_bounds = array<i64: 1, 128>}, {transform_indices = @transform_5, window_bounds = array<i64: 16, 128>}]} {
    %c0_i32 = arith.constant 0 : i32
    %0 = arith.cmpi eq, %arg1, %c0_i32 : i32
    %1 = arith.extui %0 : i1 to i32
    %c0_i32_0 = arith.constant 0 : i32
    %2 = arith.cmpi ne, %1, %c0_i32_0 : i32
    scf.if %2 {
      %cst_16 = arith.constant 0.000000e+00 : f32
      %19 = vector.broadcast %cst_16 : f32 to vector<16x128xf32>
      %c0_17 = arith.constant 0 : index
      %c0_18 = arith.constant 0 : index
      %20 = vector.load %arg8[%c0_17, %c0_18] : memref<16x128xf32, #tpu.memory_space<vmem>>, vector<16x128xf32>
      tpu.vector_store %arg8[%c0_17, %c0_18], %19 {strides = array<i32>} : memref<16x128xf32, #tpu.memory_space<vmem>>, vector<16x128xf32>,
    } else {
    }
    %c0 = arith.constant 0 : index
    %c0_1 = arith.constant 0 : index
    %3 = vector.load %arg2[%c0, %c0_1] : memref<16x128xf32, #tpu.memory_space<vmem>>, vector<16x128xf32>
    %c0_2 = arith.constant 0 : index
    %c0_3 = arith.constant 0 : index
    %4 = vector.load %arg3[%c0_2, %c0_3] : memref<128x256xf32, #tpu.memory_space<vmem>>, vector<128x256xf32>
    %cst = arith.constant dense<0.000000e+00> : vector<16x256xf32>
    %5 = tpu.matmul %3, %4, %cst {dimension_numbers = #tpu.dot_dimension_numbers<[1], [0], [0], [1], [0, 0, 1, 1], [], []>} : vector<16x128xf32>, vector<128x256xf32>, vector<16x256xf32> -> vector<16x256xf32>
    %c0_4 = arith.constant 0 : index
    %c0_5 = arith.constant 0 : index
    %6 = vector.load %arg4[%c0_4, %c0_5] : memref<1x256xf32, #tpu.memory_space<vmem>>, vector<1x256xf32>
    %7 = vector.broadcast %6 : vector<1x256xf32> to vector<16x256xf32>
    %8 = arith.addf %5, %7 : vector<16x256xf32>
    %cst_6 = arith.constant 0.000000e+00 : f32
    %9 = vector.broadcast %cst_6 : f32 to vector<16x256xf32>
    %10 = arith.maximumf %8, %9 : vector<16x256xf32>
    %c0_7 = arith.constant 0 : index
    %c0_8 = arith.constant 0 : index
    %11 = vector.load %arg8[%c0_7, %c0_8] : memref<16x128xf32, #tpu.memory_space<vmem>>, vector<16x128xf32>
    %c0_9 = arith.constant 0 : index
    %c0_10 = arith.constant 0 : index
    %12 = vector.load %arg5[%c0_9, %c0_10] : memref<256x128xf32, #tpu.memory_space<vmem>>, vector<256x128xf32>
    %cst_11 = arith.constant dense<0.000000e+00> : vector<16x128xf32>
    %13 = tpu.matmul %10, %12, %cst_11 {dimension_numbers = #tpu.dot_dimension_numbers<[1], [0], [0], [1], [0, 0, 1, 1], [], []>} : vector<16x256xf32>, vector<256x128xf32>, vector<16x128xf32> -> vector<16x128xf32>
    %14 = arith.addf %11, %13 : vector<16x128xf32>
    %c0_12 = arith.constant 0 : index
    %c0_13 = arith.constant 0 : index
    %15 = vector.load %arg8[%c0_12, %c0_13] : memref<16x128xf32, #tpu.memory_space<vmem>>, vector<16x128xf32>
    tpu.vector_store %arg8[%c0_12, %c0_13], %14 {strides = array<i32>} : memref<16x128xf32, #tpu.memory_space<vmem>>, vector<16x128xf32>,
    %c0_i32_14 = arith.constant 0 : i32
    %16 = arith.cmpi eq, %arg1, %c0_i32_14 : i32
    %17 = arith.extui %16 : i1 to i32
    %c0_i32_15 = arith.constant 0 : i32
    %18 = arith.cmpi ne, %17, %c0_i32_15 : i32
    scf.if %18 {
      %c0_16 = arith.constant 0 : index
      %c0_17 = arith.constant 0 : index
      %19 = vector.load %arg8[%c0_16, %c0_17] : memref<16x128xf32, #tpu.memory_space<vmem>>, vector<16x128xf32>
      %c0_18 = arith.constant 0 : index
      %c0_19 = arith.constant 0 : index
      %20 = vector.load %arg6[%c0_18, %c0_19] : memref<1x128xf32, #tpu.memory_space<vmem>>, vector<1x128xf32>
      %21 = vector.broadcast %20 : vector<1x128xf32> to vector<16x128xf32>
      %22 = arith.addf %19, %21 : vector<16x128xf32>
      %c0_20 = arith.constant 0 : index
      %c0_21 = arith.constant 0 : index
      %23 = vector.load %arg7[%c0_20, %c0_21] : memref<16x128xf32, #tpu.memory_space<vmem>>, vector<16x128xf32>
      tpu.vector_store %arg7[%c0_20, %c0_21], %22 {strides = array<i32>} : memref<16x128xf32, #tpu.memory_space<vmem>>, vector<16x128xf32>,
    } else {
    }
    return
  }
  func.func @transform_0(%arg0: i32, %arg1: i32) -> (i32, i32) {
    %c0_i32 = arith.constant 0 : i32
    %c0_i32_0 = arith.constant 0 : i32
    return %arg0, %c0_i32 : i32, i32
  }
  func.func @transform_1(%arg0: i32, %arg1: i32) -> (i32, i32) {
    %c0_i32 = arith.constant 0 : i32
    %c0_i32_0 = arith.constant 0 : i32
    return %c0_i32, %arg1 : i32, i32
  }
  func.func @transform_2(%arg0: i32, %arg1: i32) -> (i32, i32) {
    %c0_i32 = arith.constant 0 : i32
    %c0_i32_0 = arith.constant 0 : i32
    return %c0_i32, %arg1 : i32, i32
  }
  func.func @transform_3(%arg0: i32, %arg1: i32) -> (i32, i32) {
    %c0_i32 = arith.constant 0 : i32
    %c0_i32_0 = arith.constant 0 : i32
    return %arg1, %c0_i32 : i32, i32
  }
  func.func @transform_4(%arg0: i32, %arg1: i32) -> (i32, i32) {
    %c0_i32 = arith.constant 0 : i32
    %c0_i32_0 = arith.constant 0 : i32
    %c0_i32_1 = arith.constant 0 : i32
    return %c0_i32, %c0_i32_0 : i32, i32
  }
  func.func @transform_5(%arg0: i32, %arg1: i32) -> (i32, i32) {
    %c0_i32 = arith.constant 0 : i32
    %c0_i32_0 = arith.constant 0 : i32
    return %arg0, %c0_i32 : i32, i32
  }
}

</mosaic_0001>

<llo_original>
// kernel: tpu_custom_call.1
$region0: #{tpu_custom_call.1}
  #allocation0 [shape = 'u32[]', space=smem, size = 0x4, offset = 0x4, fixed_abs, tag = 'smem constant byte address 0x4 - core index']
  #allocation1 [shape = 'u32[144,128]{1,0:T(1,128)}', space=vmem, size = 0x12000, scoped, tag = 'internal scratch']
  #allocation2 [shape = 'f32[16,128]{1,0:T(8,128)}', space=vmem, size = 0x2000, scoped, tag = 'scratch operand']
  %s0 = inlined_call_operand.hbm [shape: f32[16,128], index: 0, kind: input, shape index: {}]
  %s1 = inlined_call_operand.hbm [shape: f32[128,256], index: 1, kind: input, shape index: {}]
  %s2 = inlined_call_operand.hbm [shape: f32[1,256], index: 2, kind: input, shape index: {}]
  %s3 = inlined_call_operand.hbm [shape: f32[256,128], index: 3, kind: input, shape index: {}]
  %s4 = inlined_call_operand.hbm [shape: f32[1,128], index: 4, kind: input, shape index: {}]
  %s5 = inlined_call_operand.hbm [shape: f32[16,128], index: 5, kind: output, shape index: {}]
  %s6 = sld [smem:[#allocation0]]
  $region58: #{tpu_custom_call.1} parent=0
    _
  %s8 = ssub.s32 1, %s6
  %s9 = scalar_select 0, %s8, %s6
  $region1: #{tpu_custom_call.1} parent=0
    #allocation3 [shape = 'u8[8192]{0}', space=vmem, size = 0x2000, scoped, tag = 'input window, operand 0, single buffered']
    #allocation4 [shape = 's32[1]{0}', space=sflag, size = 0x4, scoped, tag = 'scoped memory for tpu_custom_call.1']
    #allocation5 [shape = 's32[1]{0}', space=sflag, size = 0x4, scoped, tag = 'scoped memory for tpu_custom_call.1']
    #allocation6 [shape = 'u8[131072]{0}', space=vmem, size = 0x20000, scoped, tag = 'input window, operand 1, single buffered']
    #allocation7 [shape = 's32[1]{0}', space=sflag, size = 0x4, scoped, tag = 'scoped memory for tpu_custom_call.1']
    #allocation8 [shape = 'u8[1024]{0}', space=vmem, size = 0x400, scoped, tag = 'input window, operand 2, single buffered']
    #allocation9 [shape = 'u8[131072]{0}', space=vmem, size = 0x20000, scoped, tag = 'input window, operand 3, single buffered']
    #allocation10 [shape = 's32[1]{0}', space=sflag, size = 0x4, scoped, tag = 'scoped memory for tpu_custom_call.1']
    #allocation11 [shape = 'u8[512]{0}', space=vmem, size = 0x400, scoped, tag = 'input window, operand 4, single buffered']
    #allocation12 [shape = 'u8[8192]{0}', space=vmem, size = 0x2000, scoped, tag = 'output window, operand 0, single buffered']
    %10 = vsyncpa [#allocation4], 0
    %11 = vsyncpa [#allocation7], 0
    %12 = vsyncpa [#allocation10], 0
    %13 = vsyncpa [#allocation5], 0
    // Predicated region
    $region2: #{tpu_custom_call.1} parent=1 // pred_check
      _
    $region3: #{tpu_custom_call.1} parent=1 // pred_check_branch
      %15 = sbr.rel (0) target = $region5
    $region4: #{tpu_custom_call.1} parent=1 // pred_region
      %s17 = ssub.s32 256, 256
      %18 = vsyncadd [#allocation4], %s17
      %s19 = sshll.u32 [#allocation3], 4
      %s20 = int_to_ptr.vmem [resolvable:$true] %s19
      %25 = dma.hbm_to_vmem [thread:$0]  %s0, 256, %s20, [#allocation4], 128, 128, 8
    $region5: #{tpu_custom_call.1} parent=1 // pred_fallthru
      _
    // Predicated region
    $region6: #{tpu_custom_call.1} parent=1 // pred_check
      _
    $region7: #{tpu_custom_call.1} parent=1 // pred_check_branch
      %27 = sbr.rel (0) target = $region9
    $region8: #{tpu_custom_call.1} parent=1 // pred_region
      %s29 = ssub.s32 4096, 4096
      %30 = vsyncadd [#allocation7], %s29
      %s31 = sshll.u32 [#allocation6], 4
      %s32 = int_to_ptr.vmem [resolvable:$true] %s31
      %37 = dma.hbm_to_vmem [thread:$0]  %s1, 4096, %s32, [#allocation7], 256, 256, 16
    $region9: #{tpu_custom_call.1} parent=1 // pred_fallthru
      _
    // Predicated region
    $region10: #{tpu_custom_call.1} parent=1 // pred_check
      _
    $region11: #{tpu_custom_call.1} parent=1 // pred_check_branch
      %39 = sbr.rel (0) target = $region13
    $region12: #{tpu_custom_call.1} parent=1 // pred_region
      %s41 = ssub.s32 32, 32
      %42 = vsyncadd [#allocation7], %s41
      %s44 = sshll.u32 [#allocation8], 4
      %s45 = int_to_ptr.vmem [resolvable:$true] %s44
      %47 = dma.hbm_to_vmem [thread:$0]  %s2, 32, %s45, [#allocation7]
    $region13: #{tpu_custom_call.1} parent=1 // pred_fallthru
      _
    // Predicated region
    $region14: #{tpu_custom_call.1} parent=1 // pred_check
      _
    $region15: #{tpu_custom_call.1} parent=1 // pred_check_branch
      %49 = sbr.rel (0) target = $region17
    $region16: #{tpu_custom_call.1} parent=1 // pred_region
      %s51 = ssub.s32 4096, 4096
      %52 = vsyncadd [#allocation10], %s51
      %s53 = sshll.u32 [#allocation9], 4
      %s54 = int_to_ptr.vmem [resolvable:$true] %s53
      %59 = dma.hbm_to_vmem [thread:$0]  %s3, 4096, %s54, [#allocation10], 128, 128, 8
    $region17: #{tpu_custom_call.1} parent=1 // pred_fallthru
      _
    // Predicated region
    $region18: #{tpu_custom_call.1} parent=1 // pred_check
      _
    $region19: #{tpu_custom_call.1} parent=1 // pred_check_branch
      %61 = sbr.rel (0) target = $region21
    $region20: #{tpu_custom_call.1} parent=1 // pred_region
      %s63 = ssub.s32 16, 16
      %64 = vsyncadd [#allocation10], %s63
      %s66 = sshll.u32 [#allocation11], 4
      %s67 = int_to_ptr.vmem [resolvable:$true] %s66
      %69 = dma.hbm_to_vmem [thread:$0]  %s4, 16, %s67, [#allocation10]
    $region21: #{tpu_custom_call.1} parent=1 // pred_fallthru
      _
    // Predicated region
    $region22: #{tpu_custom_call.1} parent=1 // pred_check
      _
    $region23: #{tpu_custom_call.1} parent=1 // pred_check_branch
      %71 = sbr.rel (0) target = $region25
    $region24: #{tpu_custom_call.1} parent=1 // pred_region
      %72 = dma.done [#allocation4], 256
    $region25: #{tpu_custom_call.1} parent=1 // pred_fallthru
      _
    // Predicated region
    $region26: #{tpu_custom_call.1} parent=1 // pred_check
      _
    $region27: #{tpu_custom_call.1} parent=1 // pred_check_branch
      %74 = sbr.rel (0) target = $region29
    $region28: #{tpu_custom_call.1} parent=1 // pred_region
      %75 = dma.done [#allocation7], 4096
    $region29: #{tpu_custom_call.1} parent=1 // pred_fallthru
      _
    // Predicated region
    $region30: #{tpu_custom_call.1} parent=1 // pred_check
      _
    $region31: #{tpu_custom_call.1} parent=1 // pred_check_branch
      %77 = sbr.rel (0) target = $region33
    $region32: #{tpu_custom_call.1} parent=1 // pred_region
      %78 = dma.done [#allocation7], 32
    $region33: #{tpu_custom_call.1} parent=1 // pred_fallthru
      _
    // Predicated region
    $region34: #{tpu_custom_call.1} parent=1 // pred_check
      _
    $region35: #{tpu_custom_call.1} parent=1 // pred_check_branch
      %80 = sbr.rel (0) target = $region37
    $region36: #{tpu_custom_call.1} parent=1 // pred_region
      %81 = dma.done [#allocation10], 4096
    $region37: #{tpu_custom_call.1} parent=1 // pred_fallthru
      _
    // Predicated region
    $region38: #{tpu_custom_call.1} parent=1 // pred_check
      _
    $region39: #{tpu_custom_call.1} parent=1 // pred_check_branch
      %83 = sbr.rel (0) target = $region41
    $region40: #{tpu_custom_call.1} parent=1 // pred_region
      %84 = dma.done [#allocation10], 16
    $region41: #{tpu_custom_call.1} parent=1 // pred_fallthru
      _
    %p85 = scmp.eq.s32.totalorder 0, 0
    // Predicated region
    $region42: #{tpu_custom_call.1} parent=1 // pred_check
      %p86 = pneg %p85
    $region43: #{tpu_custom_call.1} parent=1 // pred_check_branch
      %88 = sbr.rel (%p86) target = $region45
    $region44: #{tpu_custom_call.1} parent=1 // pred_region
      %89 = vst [vmem:[#allocation2] sm:$0xff] 0.0
      %90 = vst [vmem:[#allocation2 + $0x8] sm:$0xff] 0.0
    $region45: #{tpu_custom_call.1} parent=1 // pred_fallthru
      _
    %v91 = vld [vmem:[#allocation3] sm:$0xff]
    %v92 = vld [vmem:[#allocation3 + $0x8] sm:$0xff]
    %v93 = vld [vmem:[#allocation6] sm:$0xff]
    %v94 = vld [vmem:[#allocation6 + $0x8] sm:$0xff]
    %v95 = vld [vmem:[#allocation6 + $0x10] sm:$0xff]
    %v96 = vld [vmem:[#allocation6 + $0x18] sm:$0xff]
    %v97 = vld [vmem:[#allocation6 + $0x20] sm:$0xff]
    %v98 = vld [vmem:[#allocation6 + $0x28] sm:$0xff]
    %v99 = vld [vmem:[#allocation6 + $0x30] sm:$0xff]
    %v100 = vld [vmem:[#allocation6 + $0x38] sm:$0xff]
    %v101 = vld [vmem:[#allocation6 + $0x40] sm:$0xff]
    %v102 = vld [vmem:[#allocation6 + $0x48] sm:$0xff]
    %v103 = vld [vmem:[#allocation6 + $0x50] sm:$0xff]
    %v104 = vld [vmem:[#allocation6 + $0x58] sm:$0xff]
    %v105 = vld [vmem:[#allocation6 + $0x60] sm:$0xff]
    %v106 = vld [vmem:[#allocation6 + $0x68] sm:$0xff]
    %v107 = vld [vmem:[#allocation6 + $0x70] sm:$0xff]
    %v108 = vld [vmem:[#allocation6 + $0x78] sm:$0xff]
    %v109 = vld [vmem:[#allocation6 + $0x80] sm:$0xff]
    %v110 = vld [vmem:[#allocation6 + $0x88] sm:$0xff]
    %v111 = vld [vmem:[#allocation6 + $0x90] sm:$0xff]
    %v112 = vld [vmem:[#allocation6 + $0x98] sm:$0xff]
    %v113 = vld [vmem:[#allocation6 + $0xa0] sm:$0xff]
    %v114 = vld [vmem:[#allocation6 + $0xa8] sm:$0xff]
    %v115 = vld [vmem:[#allocation6 + $0xb0] sm:$0xff]
    %v116 = vld [vmem:[#allocation6 + $0xb8] sm:$0xff]
    %v117 = vld [vmem:[#allocation6 + $0xc0] sm:$0xff]
    %v118 = vld [vmem:[#allocation6 + $0xc8] sm:$0xff]
    %v119 = vld [vmem:[#allocation6 + $0xd0] sm:$0xff]
    %v120 = vld [vmem:[#allocation6 + $0xd8] sm:$0xff]
    %v121 = vld [vmem:[#allocation6 + $0xe0] sm:$0xff]
    %v122 = vld [vmem:[#allocation6 + $0xe8] sm:$0xff]
    %v123 = vld [vmem:[#allocation6 + $0xf0] sm:$0xff]
    %v124 = vld [vmem:[#allocation6 + $0xf8] sm:$0xff]
    %v125 = vld [vmem:[#allocation8] sm:$0x3]
    %v127 = vlaneseq
    %v128 = vshrl.u32 %v127, 7
    %v129 = vsub.s32 0, %v128
    %v130 = vrot.slane %v125, %v129
    %v131 = vlaneseq
    %v132 = vshrl.u32 %v131, 7
    %v133 = vsub.s32 1, %v132
    %v134 = vrot.slane %v125, %v133
    %137 = vmatprep.subr.mxu0 %v94
    %138 = vmatpush1.msra.mxu0 %v93
    %139 = vmatprep.subr.mxu0 %v96
    %140 = vmatpush1.msra.mxu0 %v95
    %141 = vmatprep.subr.mxu0 %v98
    %142 = vmatpush1.msra.mxu0 %v97
    %143 = vmatprep.subr.mxu0 %v100
    %144 = vmatpush1.msra.mxu0 %v99
    %145 = vmatprep.subr.mxu0 %v102
    %146 = vmatpush1.msra.mxu0 %v101
    %147 = vmatprep.subr.mxu0 %v104
    %148 = vmatpush1.msra.mxu0 %v103
    %149 = vmatprep.subr.mxu0 %v106
    %150 = vmatpush1.msra.mxu0 %v105
    %151 = vmatprep.subr.mxu0 %v108
    %152 = vmatpush1.msra.mxu0 %v107
    %153 = vmatprep.subr.mxu0 %v110
    %154 = vmatpush1.msra.mxu0 %v109
    %155 = vmatprep.subr.mxu0 %v112
    %156 = vmatpush1.msra.mxu0 %v111
    %157 = vmatprep.subr.mxu0 %v114
    %158 = vmatpush1.msra.mxu0 %v113
    %159 = vmatprep.subr.mxu0 %v116
    %160 = vmatpush1.msra.mxu0 %v115
    %161 = vmatprep.subr.mxu0 %v118
    %162 = vmatpush1.msra.mxu0 %v117
    %163 = vmatprep.subr.mxu0 %v120
    %164 = vmatpush1.msra.mxu0 %v119
    %165 = vmatprep.subr.mxu0 %v122
    %166 = vmatpush1.msra.mxu0 %v121
    %167 = vmatprep.subr.mxu0 %v124
    %168 = vmatpush1.msra.mxu0 %v123
    %169 = vmatprep.subr.mxu0 0.0
    %170 = vmatpush1.msra.mxu0 0.0
    %171 = vmatprep.subr.mxu0 0.0
    %172 = vmatpush1.msra.mxu0 0.0
    %173 = vmatprep.subr.mxu0 0.0
    %174 = vmatpush1.msra.mxu0 0.0
    %175 = vmatprep.subr.mxu0 0.0
    %176 = vmatpush1.msra.mxu0 0.0
    %177 = vmatprep.subr.mxu0 0.0
    %178 = vmatpush1.msra.mxu0 0.0
    %179 = vmatprep.subr.mxu0 0.0
    %180 = vmatpush1.msra.mxu0 0.0
    %181 = vmatprep.subr.mxu0 0.0
    %182 = vmatpush1.msra.mxu0 0.0
    %183 = vmatprep.subr.mxu0 0.0
    %184 = vmatpush1.msra.mxu0 0.0
    %185 = vmatprep.subr.mxu0 0.0
    %186 = vmatpush1.msra.mxu0 0.0
    %187 = vmatprep.subr.mxu0 0.0
    %188 = vmatpush1.msra.mxu0 0.0
    %189 = vmatprep.subr.mxu0 0.0
    %190 = vmatpush1.msra.mxu0 0.0
    %191 = vmatprep.subr.mxu0 0.0
    %192 = vmatpush1.msra.mxu0 0.0
    %193 = vmatprep.subr.mxu0 0.0
    %194 = vmatpush1.msra.mxu0 0.0
    %195 = vmatprep.subr.mxu0 0.0
    %196 = vmatpush1.msra.mxu0 0.0
    %197 = vmatprep.subr.mxu0 0.0
    %198 = vmatpush1.msra.mxu0 0.0
    %199 = vmatprep.subr.mxu0 0.0
    %200 = vmatpush1.msra.mxu0 0.0
    %201 = vmatprep.mubr.f32.mxu0 0.0
    %202 = vmatmul.mubr.f32.gmra.mrb[0].mxu0 %v91
    %v203 = vpop.f32.mrb[0].mxu0
    %v204 = vadd.f32 %v130, %v203
    %v205 = vpop.f32.mrb[0].mxu0
    %v206 = vadd.f32 %v134, %v205
    %207 = vmatprep.mubr.f32.mxu0 0.0
    %208 = vmatmul.mubr.f32.gmra.mrb[0].mxu0 %v92
    %v209 = vpop.f32.mrb[0].mxu0
    %v210 = vadd.f32 %v130, %v209
    %v211 = vpop.f32.mrb[0].mxu0
    %v212 = vadd.f32 %v134, %v211
    %213 = vdwg.mxu0
    %v214 = vmax.f32 %v204, 0.0
    %v215 = vmax.f32 %v206, 0.0
    %v216 = vmax.f32 %v210, 0.0
    %v217 = vmax.f32 %v212, 0.0
    %v218 = vld [vmem:[#allocation2] sm:$0xff]
    %v219 = vld [vmem:[#allocation2 + $0x8] sm:$0xff]
    %v220 = vld [vmem:[#allocation9] sm:$0xff]
    %v221 = vld [vmem:[#allocation9 + $0x8] sm:$0xff]
    %v222 = vld [vmem:[#allocation9 + $0x10] sm:$0xff]
    %v223 = vld [vmem:[#allocation9 + $0x18] sm:$0xff]
    %v224 = vld [vmem:[#allocation9 + $0x20] sm:$0xff]
    %v225 = vld [vmem:[#allocation9 + $0x28] sm:$0xff]
    %v226 = vld [vmem:[#allocation9 + $0x30] sm:$0xff]
    %v227 = vld [vmem:[#allocation9 + $0x38] sm:$0xff]
    %v228 = vld [vmem:[#allocation9 + $0x40] sm:$0xff]
    %v229 = vld [vmem:[#allocation9 + $0x48] sm:$0xff]
    %v230 = vld [vmem:[#allocation9 + $0x50] sm:$0xff]
    %v231 = vld [vmem:[#allocation9 + $0x58] sm:$0xff]
    %v232 = vld [vmem:[#allocation9 + $0x60] sm:$0xff]
    %v233 = vld [vmem:[#allocation9 + $0x68] sm:$0xff]
    %v234 = vld [vmem:[#allocation9 + $0x70] sm:$0xff]
    %v235 = vld [vmem:[#allocation9 + $0x78] sm:$0xff]
    %v236 = vld [vmem:[#allocation9 + $0x80] sm:$0xff]
    %v237 = vld [vmem:[#allocation9 + $0x88] sm:$0xff]
    %v238 = vld [vmem:[#allocation9 + $0x90] sm:$0xff]
    %v239 = vld [vmem:[#allocation9 + $0x98] sm:$0xff]
    %v240 = vld [vmem:[#allocation9 + $0xa0] sm:$0xff]
    %v241 = vld [vmem:[#allocation9 + $0xa8] sm:$0xff]
    %v242 = vld [vmem:[#allocation9 + $0xb0] sm:$0xff]
    %v243 = vld [vmem:[#allocation9 + $0xb8] sm:$0xff]
    %v244 = vld [vmem:[#allocation9 + $0xc0] sm:$0xff]
    %v245 = vld [vmem:[#allocation9 + $0xc8] sm:$0xff]
    %v246 = vld [vmem:[#allocation9 + $0xd0] sm:$0xff]
    %v247 = vld [vmem:[#allocation9 + $0xd8] sm:$0xff]
    %v248 = vld [vmem:[#allocation9 + $0xe0] sm:$0xff]
    %v249 = vld [vmem:[#allocation9 + $0xe8] sm:$0xff]
    %v250 = vld [vmem:[#allocation9 + $0xf0] sm:$0xff]
    %v251 = vld [vmem:[#allocation9 + $0xf8] sm:$0xff]
    %252 = vmatprep.subr.mxu0 0.0
    %253 = vmatpush1.msra.mxu0 %v220
    %254 = vmatprep.subr.mxu0 0.0
    %255 = vmatpush1.msra.mxu0 %v221
    %256 = vmatprep.subr.mxu0 0.0
    %257 = vmatpush1.msra.mxu0 %v222
    %258 = vmatprep.subr.mxu0 0.0
    %259 = vmatpush1.msra.mxu0 %v223
    %260 = vmatprep.subr.mxu0 0.0
    %261 = vmatpush1.msra.mxu0 %v224
    %262 = vmatprep.subr.mxu0 0.0
    %263 = vmatpush1.msra.mxu0 %v225
    %264 = vmatprep.subr.mxu0 0.0
    %265 = vmatpush1.msra.mxu0 %v226
    %266 = vmatprep.subr.mxu0 0.0
    %267 = vmatpush1.msra.mxu0 %v227
    %268 = vmatprep.subr.mxu0 0.0
    %269 = vmatpush1.msra.mxu0 %v228
    %270 = vmatprep.subr.mxu0 0.0
    %271 = vmatpush1.msra.mxu0 %v229
    %272 = vmatprep.subr.mxu0 0.0
    %273 = vmatpush1.msra.mxu0 %v230
    %274 = vmatprep.subr.mxu0 0.0
    %275 = vmatpush1.msra.mxu0 %v231
    %276 = vmatprep.subr.mxu0 0.0
    %277 = vmatpush1.msra.mxu0 %v232
    %278 = vmatprep.subr.mxu0 0.0
    %279 = vmatpush1.msra.mxu0 %v233
    %280 = vmatprep.subr.mxu0 0.0
    %281 = vmatpush1.msra.mxu0 %v234
    %282 = vmatprep.subr.mxu0 0.0
    %283 = vmatpush1.msra.mxu0 %v235
    %284 = vmatprep.subr.mxu0 0.0
    %285 = vmatpush1.msra.mxu0 %v236
    %286 = vmatprep.subr.mxu0 0.0
    %287 = vmatpush1.msra.mxu0 %v237
    %288 = vmatprep.subr.mxu0 0.0
    %289 = vmatpush1.msra.mxu0 %v238
    %290 = vmatprep.subr.mxu0 0.0
    %291 = vmatpush1.msra.mxu0 %v239
    %292 = vmatprep.subr.mxu0 0.0
    %293 = vmatpush1.msra.mxu0 %v240
    %294 = vmatprep.subr.mxu0 0.0
    %295 = vmatpush1.msra.mxu0 %v241
    %296 = vmatprep.subr.mxu0 0.0
    %297 = vmatpush1.msra.mxu0 %v242
    %298 = vmatprep.subr.mxu0 0.0
    %299 = vmatpush1.msra.mxu0 %v243
    %300 = vmatprep.subr.mxu0 0.0
    %301 = vmatpush1.msra.mxu0 %v244
    %302 = vmatprep.subr.mxu0 0.0
    %303 = vmatpush1.msra.mxu0 %v245
    %304 = vmatprep.subr.mxu0 0.0
    %305 = vmatpush1.msra.mxu0 %v246
    %306 = vmatprep.subr.mxu0 0.0
    %307 = vmatpush1.msra.mxu0 %v247
    %308 = vmatprep.subr.mxu0 0.0
    %309 = vmatpush1.msra.mxu0 %v248
    %310 = vmatprep.subr.mxu0 0.0
    %311 = vmatpush1.msra.mxu0 %v249
    %312 = vmatprep.subr.mxu0 0.0
    %313 = vmatpush1.msra.mxu0 %v250
    %314 = vmatprep.subr.mxu0 0.0
    %315 = vmatpush1.msra.mxu0 %v251
    %316 = vmatprep.mubr.f32.mxu0 %v215
    %317 = vmatmul.mubr.f32.gmra.mrb[0].mxu0 %v214
    %v318 = vpop.f32.mrb[0].mxu0
    %v319 = vadd.f32 0.0, %v318
    %v320 = vpop.f32.mrb[0].mxu0
    %321 = vmatprep.mubr.f32.mxu0 %v217
    %322 = vmatmul.mubr.f32.gmra.mrb[0].mxu0 %v216
    %v323 = vpop.f32.mrb[0].mxu0
    %v324 = vadd.f32 0.0, %v323
    %v325 = vpop.f32.mrb[0].mxu0
    %326 = vdwg.mxu0
    %v327 = vadd.f32 %v218, %v319
    %v328 = vadd.f32 %v219, %v324
    %329 = vst [vmem:[#allocation2] sm:$0xff] %v327
    %330 = vst [vmem:[#allocation2 + $0x8] sm:$0xff] %v328
    // Predicated region
    $region46: #{tpu_custom_call.1} parent=1 // pred_check
      %p331 = pneg %p85
    $region47: #{tpu_custom_call.1} parent=1 // pred_check_branch
      %333 = sbr.rel (%p331) target = $region49
    $region48: #{tpu_custom_call.1} parent=1 // pred_region
      %v334 = vld [vmem:[#allocation2] sm:$0xff]
      %v335 = vld [vmem:[#allocation2 + $0x8] sm:$0xff]
      %v336 = vld [vmem:[#allocation11] sm:$0x1]
      %v338 = vlaneseq
      %v339 = vshrl.u32 %v338, 7
      %v340 = vsub.s32 0, %v339
      %v341 = vrot.slane %v336, %v340
      %v343 = vadd.f32 %v334, %v341
      %v344 = vadd.f32 %v335, %v341
      %345 = vst [vmem:[#allocation12] sm:$0xff] %v343
      %346 = vst [vmem:[#allocation12 + $0x8] sm:$0xff] %v344
    $region49: #{tpu_custom_call.1} parent=1 // pred_fallthru
      _
    // Predicated region
    $region50: #{tpu_custom_call.1} parent=1 // pred_check
      _
    $region51: #{tpu_custom_call.1} parent=1 // pred_check_branch
      %348 = sbr.rel (0) target = $region53
    $region52: #{tpu_custom_call.1} parent=1 // pred_region
      %s350 = ssub.s32 256, 256
      %351 = vsyncadd [#allocation5], %s350
      %s352 = sshll.u32 [#allocation12], 4
      %s353 = int_to_ptr.vmem [resolvable:$true] %s352
      %358 = dma.vmem_to_hbm [thread:$0]  %s353, 256, %s5, [#allocation5], 128, 128, 8
    $region53: #{tpu_custom_call.1} parent=1 // pred_fallthru
      _
    // Predicated region
    $region54: #{tpu_custom_call.1} parent=1 // pred_check
      _
    $region55: #{tpu_custom_call.1} parent=1 // pred_check_branch
      %360 = sbr.rel (0) target = $region57
    $region56: #{tpu_custom_call.1} parent=1 // pred_region
      %361 = dma.done [#allocation5], 256
    $region57: #{tpu_custom_call.1} parent=1 // pred_fallthru
      _
    %362 = vsyncpa [#allocation4], 1
    %363 = vsyncpa [#allocation7], 1
    %364 = vsyncpa [#allocation10], 1
    %365 = vsyncpa [#allocation5], 1

</llo_original>
